<compile_context>
chip_gen: v5e
topology: v5e:2x2
jax: 0.10.0
libtpu: 0.0.40
codegen_flags: <defaults>
</compile_context>

<pallas_src>
import functools
import math
import random

import jax
import jax.numpy as jnp
from jax.experimental import pallas as pl
from jax.experimental.pallas import tpu as pltpu


# ----------------------------------------------------------------------------
# Pallas kernel: elementwise  y = x * gain + bias
# gain/bias are f32 scalars in SMEM (no recompile per randomized value).
# ----------------------------------------------------------------------------
def _scale_shift_kernel(gb_ref, x_ref, o_ref):
    gain = gb_ref[0]
    bias = gb_ref[1]
    x = x_ref[...]
    if jnp.issubdtype(x_ref.dtype, jnp.floating) and x_ref.dtype != jnp.float32:
        # bf16/f16: compute natively (less vreg + vld/vst traffic on v6e/v7x;
        # v5e legalizes to f32 internally, so correctness is unchanged).
        y = x * gain.astype(x.dtype) + bias.astype(x.dtype)
    else:
        y = x.astype(jnp.float32) * gain + bias
        if jnp.issubdtype(o_ref.dtype, jnp.integer):
            y = jnp.rint(y)  # round-to-nearest instead of truncation for int outputs
    o_ref[...] = y.astype(o_ref.dtype)


# ----------------------------------------------------------------------------
# Tiling configuration
# ----------------------------------------------------------------------------
_COL_CANDIDATES = (512, 1024, 2048, 4096, 256, 128)  # lane-dense widths (x128 lanes)
_TARGET_BLOCK_BYTES = 4 << 20   # ~4 MiB/block amortizes the ~0.35 us/grid-step overhead
_TARGET_GRID_STEPS = 4          # keep >= 4 grid steps so v7x's 2 TCs both get work
_VMEM_LIMIT_BYTES = 40 << 20    # 4 MiB x (in+out) x double-buffer = 16 MiB << limit;
                                # safe on v5e/v6e (128 MiB phys) and v7x (64 MiB phys)


def _round_up(n, m):
    return (n + m - 1) // m * m


def _sublane_multiple(itemsize):
    # Packed minimum sublane tile: (8,128) f32, (16,128) bf16/f16, (32,128) int8/fp8.
    return {4: 8, 2: 16, 1: 32}.get(itemsize, 8)


@functools.lru_cache(maxsize=None)
def _pallas_min_bytes():
    # On v7x's ~3.2 TB/s HBM, launch/warmup overhead dominates up to larger sizes.
    try:
        kind = jax.devices()[0].device_kind.lower()
    except Exception:
        return 1 << 20
    if any(g in kind for g in ("v2", "v3", "v4", "v5")):
        return 1 << 20
    return 2 << 20


@functools.lru_cache(maxsize=None)
def _build_scale_shift_pallas(shape, dtype_name):
    """Cached, jitted (zero-copy reshape -> tiled pallas_call -> reshape) callable,
    or None if the element count is not a multiple of 128 (lane-ragged)."""
    dtype = jnp.dtype(dtype_name)
    n = math.prod(shape)
    itemsize = dtype.itemsize

    cols = next((c for c in _COL_CANDIDATES if n > 0 and n % c == 0), None)
    if cols is None:
        return None  # ragged: fused XLA is already at the HBM roofline for this op

    rows = n // cols
    sub = _sublane_multiple(itemsize)
    bytes_per_row = cols * itemsize

    # Row tile: ~_TARGET_BLOCK_BYTES per block (dtype-scaled byte footprint), but keep
    # >= _TARGET_GRID_STEPS grid steps when rows permit; always a multiple of the
    # packed sublane tile when it is a proper sub-block.
    tile_bytes_cap = max(sub, (_TARGET_BLOCK_BYTES // bytes_per_row) // sub * sub)
    tile_steps_cap = _round_up(pl.cdiv(rows, _TARGET_GRID_STEPS), sub)
    tile_r = min(tile_bytes_cap, tile_steps_cap)
    if tile_r >= rows:
        tile_r = rows                     # block == full dim (always a legal block shape)
    grid = (pl.cdiv(rows, tile_r),)       # uneven last block is masked by Pallas

    kernel_call = pl.pallas_call(
        _scale_shift_kernel,
        out_shape=jax.ShapeDtypeStruct((rows, cols), dtype),
        grid=grid,
        in_specs=[
            # (2,) f32 gain/bias scalars live in SMEM, passed whole (no blocking).
            pl.BlockSpec(memory_space=pltpu.MemorySpace.SMEM),
            pl.BlockSpec((tile_r, cols), lambda i: (i, 0)),
        ],
        out_specs=pl.BlockSpec((tile_r, cols), lambda i: (i, 0)),
        compiler_params=pltpu.CompilerParams(
            dimension_semantics=("parallel",),      # independent row tiles -> megacore
            vmem_limit_bytes=_VMEM_LIMIT_BYTES,
        ),
        cost_estimate=pl.CostEstimate(
            flops=2 * n, transcendentals=0, bytes_accessed=2 * n * itemsize + 8),
        # TODO(synk): input_output_aliases={1: 0} would let the output reuse the input
        # slab's HBM allocation, but only helps when the caller donates x; otherwise
        # XLA inserts a defensive copy and adds a full extra pass.
    )

    def run(gb, x):
        slab = x.reshape(rows, cols)      # contiguous row-major -> bitcast, no HBM traffic
        return kernel_call(gb, slab).reshape(shape)

    return jax.jit(run)


def _scale_shift_xla(x, gain, bias):
    """XLA fallback for tiny / lane-ragged tensors; mirrors the kernel's numerics."""
    if jnp.issubdtype(x.dtype, jnp.floating) and x.dtype != jnp.float32:
        return (x * jnp.asarray(gain, x.dtype) + jnp.asarray(bias, x.dtype)).astype(x.dtype)
    y = x.astype(jnp.float32) * gain + bias
    if jnp.issubdtype(x.dtype, jnp.integer):
        y = jnp.rint(y)
    return y.astype(x.dtype)


def scale_shift_patch(x, *, gain=1.0, bias=0.0, force_pallas=False):
    """Concrete `fn` for RandomPatchPartial: y = x * gain + bias (Pallas-backed)."""
    x = jnp.asarray(x)
    nbytes = x.size * jnp.dtype(x.dtype).itemsize
    fn = None
    if force_pallas or nbytes >= _pallas_min_bytes():
        fn = _build_scale_shift_pallas(tuple(int(d) for d in x.shape),
                                       jnp.dtype(x.dtype).name)
    if fn is None:
        # Tiny (launch overhead dominates) or lane-ragged (n % 128 != 0): fused XLA
        # already does read-n + write-n, which is optimal for this elementwise op.
        return _scale_shift_xla(x, gain, bias)
    gb = jnp.asarray([gain, bias], dtype=jnp.float32)
    return fn(gb, x)


# ----------------------------------------------------------------------------
# Faithful port of the wrapper class
# ----------------------------------------------------------------------------
class RandomPatchPartial:
    # Default fn mirrors the PyTorch base class: a lambda that returns None.
    fn = staticmethod(lambda x: None)

    def __init__(self, random_kwargs, **kwargs):
        self.kwargs = random_kwargs
        print(self.__class__.__name__, random_kwargs)
        for name, var in kwargs.items():
            if isinstance(var, staticmethod):  # unwrap so instance attr is plainly callable
                var = var.__func__
            setattr(self, name, var)

    @classmethod
    def randomize(cls):
        random_kwargs, regular_kwargs = {}, {}
        for name, var in cls.__dict__.items():
            if isinstance(var, list) and len(var) > 0:
                random_kwargs[name] = random.choice(var)
            else:
                regular_kwargs[name] = var
        regular_kwargs = {k: v for k, v in regular_kwargs.items()
                          if not k.startswith("__") and k != "randomize"}
        return cls(random_kwargs, **regular_kwargs)

    def extra_repr(self):
        name = getattr(self.fn, "__name__", "<lambda>")
        return "\n".join(
            ([name] if name != "<lambda>" else [])
            + [f"{k}:{v}" for k, v in self.__dict__.items()
               if k not in ["fn", "training"] and not k.startswith("_")
               and not repr(v).startswith("<function")])

    def forward(self, x, **kwargs):
        if getattr(self.fn, "__name__", "") == "select_tempo":
            return self.fn(self, x, **kwargs, **self.kwargs)
        return self.fn(x, **kwargs, **self.kwargs)

    __call__ = forward


# Concrete subclass with list-valued class attrs -> randomized kwargs.
class ScaleShiftPatch(RandomPatchPartial):
    fn = staticmethod(scale_shift_patch)
    gain = [0.5, 1.0, 2.0]
    bias = [0.0, 0.25]


# TODO(synk): the base-class default `fn = lambda x: None` carries no compute (forward
# returns None), and the `select_tempo` branch has no concrete fn in the spec, so only
# the concrete scale/shift path is kernelized.


if __name__ == "__main__":
    random.seed(0)  # deterministic choice of random_kwargs

    module = ScaleShiftPatch.randomize()
    gain = module.kwargs["gain"]
    bias = module.kwargs["bias"]

    key = jax.random.PRNGKey(0)
    # Small NCHW example consistent with the module (B=2, C=4, H=W=16).
    x = jax.random.normal(key, (2, 4, 16, 16), dtype=jnp.float32)

    # Force the Pallas path even though the demo tensor is below the size threshold.
    y = jax.block_until_ready(module(x, force_pallas=True))
    ref = x * gain + bias
    assert y.shape == x.shape and y.dtype == x.dtype
    assert jnp.allclose(y, ref, atol=1e-5, rtol=1e-5)

    # Second call reuses the cached, jitted pallas callable (no rebuild / retrace).
    y2 = jax.block_until_ready(module(x, force_pallas=True))
    assert jnp.allclose(y2, ref, atol=1e-5, rtol=1e-5)

    # Larger input (4 MiB f32) exercises the multi-step (grid >= 4) pipelined path.
    x_big = jax.random.normal(jax.random.PRNGKey(1), (4, 16, 128, 128), dtype=jnp.float32)
    y_big = jax.block_until_ready(module(x_big))
    assert jnp.allclose(y_big, x_big * gain + bias, atol=1e-5, rtol=1e-5)

    # bf16 path: native bf16 compute in-kernel, dtype-aware (16,128) sublane tiling.
    x_bf16 = jax.random.normal(jax.random.PRNGKey(2), (8, 256, 512), dtype=jnp.bfloat16)
    y_bf16 = jax.block_until_ready(module(x_bf16, force_pallas=True))
    ref_bf16 = (x_bf16 * jnp.bfloat16(gain) + jnp.bfloat16(bias)).astype(jnp.bfloat16)
    assert y_bf16.dtype == jnp.bfloat16
    assert jnp.allclose(y_bf16.astype(jnp.float32), ref_bf16.astype(jnp.float32),
                        atol=2e-2, rtol=2e-2)

    print("KERNEL_OK")
</pallas_src>

<mosaic_0001>
module attributes {stable_mosaic.version = 11 : i64} {
  func.func @_scale_shift_kernel(%arg0: i32, %arg1: memref<2xf32, #tpu.memory_space<smem>>, %arg2: memref<4x512xf32, #tpu.memory_space<vmem>>, %arg3: memref<4x512xf32, #tpu.memory_space<vmem>>) attributes {dimension_semantics = [#tpu.dimension_semantics<parallel>], iteration_bounds = array<i64: 1>, scalar_prefetch = 0 : i64, scratch_operands = 0 : i64, tpu.core_type = #tpu.core_type<tc>, window_params = [{transform_indices = @transform_0, window_bounds = array<i64: 2>}, {transform_indices = @transform_1, window_bounds = array<i64: 4, 512>}, {transform_indices = @transform_2, window_bounds = array<i64: 4, 512>}]} {
    %c0 = arith.constant 0 : index
    %0 = memref.load %arg1[%c0] : memref<2xf32, #tpu.memory_space<smem>>
    %c1 = arith.constant 1 : index
    %1 = memref.load %arg1[%c1] : memref<2xf32, #tpu.memory_space<smem>>
    %c0_0 = arith.constant 0 : index
    %c0_1 = arith.constant 0 : index
    %2 = vector.load %arg2[%c0_0, %c0_1] : memref<4x512xf32, #tpu.memory_space<vmem>>, vector<4x512xf32>
    %3 = vector.broadcast %0 : f32 to vector<4x512xf32>
    %4 = arith.mulf %2, %3 : vector<4x512xf32>
    %5 = vector.broadcast %1 : f32 to vector<4x512xf32>
    %6 = arith.addf %4, %5 : vector<4x512xf32>
    %c0_2 = arith.constant 0 : index
    %c0_3 = arith.constant 0 : index
    %7 = vector.load %arg3[%c0_2, %c0_3] : memref<4x512xf32, #tpu.memory_space<vmem>>, vector<4x512xf32>
    tpu.vector_store %arg3[%c0_2, %c0_3], %6 {strides = array<i32>} : memref<4x512xf32, #tpu.memory_space<vmem>>, vector<4x512xf32>,
    return
  }
  func.func @transform_0(%arg0: i32) -> i32 {
    %c0_i32 = arith.constant 0 : i32
    %c0_i32_0 = arith.constant 0 : i32
    return %c0_i32 : i32
  }
  func.func @transform_1(%arg0: i32) -> (i32, i32) {
    %c0_i32 = arith.constant 0 : i32
    %c0_i32_0 = arith.constant 0 : i32
    return %arg0, %c0_i32 : i32, i32
  }
  func.func @transform_2(%arg0: i32) -> (i32, i32) {
    %c0_i32 = arith.constant 0 : i32
    %c0_i32_0 = arith.constant 0 : i32
    return %arg0, %c0_i32 : i32, i32
  }
}

</mosaic_0001>

<llo_original>
// kernel: run.1
$region0: #{run.1}
  #allocation0 [shape = 'u32[]', space=smem, size = 0x4, offset = 0x4, fixed_abs, tag = 'smem constant byte address 0x4 - core index']
  #allocation1 [shape = 'u32[72,128]{1,0:T(1,128)}', space=vmem, size = 0x9000, scoped, tag = 'internal scratch']
  %s0 = inlined_call_operand.vmem [shape: f32[2], index: 0, kind: input, shape index: {}]
  %s1 = inlined_call_operand.vmem [shape: f32[4,512], index: 1, kind: input, shape index: {}]
  %s2 = inlined_call_operand.vmem [shape: f32[4,512], index: 2, kind: output, shape index: {}]
  %s3 = sld [smem:[#allocation0]]
  $region22: #{run.1} parent=0
    _
  %s5 = ssub.s32 1, %s3
  %s6 = scalar_select 0, %s5, %s3
  $region1: #{run.1} parent=0
    #allocation2 [shape = 'u8[512]{0}', space=smem, size = 0x200, scoped, tag = 'input window, operand 0, single buffered']
    #allocation3 [shape = 's32[1]{0}', space=sflag, size = 0x4, scoped, tag = 'scoped memory for run.1']
    %7 = vsyncpa [#allocation3], 0
    // Predicated region
    $region2: #{run.1} parent=1 // pred_check
      _
    $region3: #{run.1} parent=1 // pred_check_branch
      %9 = sbr.rel (0) target = $region5
    $region4: #{run.1} parent=1 // pred_region
      %11 = vsyncadd [#allocation3], 0
      %s13 = sshll.u32 %s0, 4
      %s14 = int_to_ptr.vmem [resolvable:$true] %s13
      %16 = dma.vmem_to_smem %s14, 16, [#allocation2], [#allocation3]
    $region5: #{run.1} parent=1 // pred_fallthru
      _
    // Predicated region
    $region6: #{run.1} parent=1 // pred_check
      _
    $region7: #{run.1} parent=1 // pred_check_branch
      %18 = sbr.rel (0) target = $region9
    $region8: #{run.1} parent=1 // pred_region
      _
    $region9: #{run.1} parent=1 // pred_fallthru
      _
    // Predicated region
    $region10: #{run.1} parent=1 // pred_check
      _
    $region11: #{run.1} parent=1 // pred_check_branch
      %20 = sbr.rel (0) target = $region13
    $region12: #{run.1} parent=1 // pred_region
      %22 = dma.done [#allocation3], 16
    $region13: #{run.1} parent=1 // pred_fallthru
      _
    %23 = sfence
    %s24 = sld [smem:[#allocation2]]
    %s25 = sld [smem:[#allocation2 + $0x1]]
    %v26 = vld [vmem:[%s1] sm:$0xff]
    %v27 = vld [vmem:[%s1 + $0x8] sm:$0xff]
    %v28 = vstv %s24
    %v29 = vmul.f32 %v26, %v28
    %v30 = vmul.f32 %v27, %v28
    %v31 = vstv %s25
    %v32 = vadd.f32 %v29, %v31
    %v33 = vadd.f32 %v30, %v31
    %34 = vst [vmem:[%s2] sm:$0xff] %v32
    %35 = vst [vmem:[%s2 + $0x8] sm:$0xff] %v33
    // Predicated region
    $region14: #{run.1} parent=1 // pred_check
      _
    $region15: #{run.1} parent=1 // pred_check_branch
      %37 = sbr.rel (0) target = $region17
    $region16: #{run.1} parent=1 // pred_region
      _
    $region17: #{run.1} parent=1 // pred_fallthru
      _
    // Predicated region
    $region18: #{run.1} parent=1 // pred_check
      _
    $region19: #{run.1} parent=1 // pred_check_branch
      %39 = sbr.rel (0) target = $region21
    $region20: #{run.1} parent=1 // pred_region
      _
    $region21: #{run.1} parent=1 // pred_fallthru
      _
    %40 = vsyncpa [#allocation3], 1

</llo_original>
